<compile_context>
chip_gen: v6e
topology: v6e:2x2x1
jax: 0.10.0
libtpu: 0.0.40
codegen_flags: <defaults>
</compile_context>

<pallas_src>
import functools

import jax
import jax.numpy as jnp
import numpy as np
from jax import lax
from jax.experimental import pallas as pl
from jax.experimental.pallas import tpu as pltpu


def _round_up(x, m):
    return (x + m - 1) // m * m


def residual_block_kernel(x1_ref, w1_ref, w23_ref, b1_ref, b23_ref, out_ref,
                          *, H, W, Cin):
    HW = H * W
    Cmid = out_ref.shape[1]
    pad = W + 1                                     # covers the largest tap shift (|dy*W+dx|)

    x1 = x1_ref[0]                                  # (K1p, HW)  conv1 im2col of x

    # ---- conv1 (3x3) as ONE fused MXU matmul (BN1 scale pre-folded) + shift + ReLU ----
    h1 = jnp.dot(w1_ref[...], x1, preferred_element_type=jnp.float32)
    h1 = jnp.maximum(h1 + b1_ref[...], 0.0)         # (Cmid, HW), lanes = H*W

    # ---- conv2 im2col: lane-shifted copies of h1 taken from a zero-padded slab ----
    zpad = jnp.zeros((Cmid, pad), jnp.float32)
    h1p = jnp.concatenate([zpad, h1, zpad], axis=1)  # (Cmid, HW + 2*pad)
    col = lax.broadcasted_iota(jnp.int32, (1, HW), 1) % W   # x coordinate of each lane

    taps = []
    for ky in range(3):
        for kx in range(3):
            dy, dx = ky - 1, kx - 1
            start = pad + dy * W + dx
            # t[:, p] = h1[:, p + dy*W + dx], zero-filled outside [0, HW)
            t = h1p[:, start:start + HW]
            # zero the columns where the +/-1 lane shift wrapped across an image row
            if dx == 1:
                t = jnp.where(col != W - 1, t, 0.0)
            elif dx == -1:
                t = jnp.where(col != 0, t, 0.0)
            taps.append(t)

    # shortcut (1x1 conv) input == centre tap of the conv1 im2col (= x itself);
    # it is the 8-row-aligned tail block of x1 (centre channels + zero pad rows).
    taps.append(x1[8 * Cin:, :])
    z = jnp.concatenate(taps, axis=0)               # (9*Cmid + Cp, HW)

    # ---- conv2 + shortcut as ONE fused matmul (BN2/BN3 scales pre-folded) ----
    out = jnp.dot(w23_ref[...], z, preferred_element_type=jnp.float32)
    out = jnp.maximum(out + b23_ref[...], 0.0)      # add combined BN shifts, ReLU
    out_ref[0] = out.astype(out_ref.dtype)


def fold_bn(gamma, beta, mean, var, eps=1e-5):
    scale = gamma / jnp.sqrt(var + eps)
    shift = beta - mean * scale
    return scale.astype(jnp.float32), shift.astype(jnp.float32)


def residual_block(x_nchw, params):
    N, Cin, H, W = x_nchw.shape
    HW = H * W
    Cmid = params["w1"].shape[-1]

    s1, b1 = fold_bn(*params["bn1"])
    s2, b2 = fold_bn(*params["bn2"])
    s3, b3 = fold_bn(*params["bn3"])

    # Tap order: the 8 non-centre taps first, centre tap (== x) LAST, so the
    # shortcut's 1x1-conv input is the sublane-aligned tail block of the im2col.
    order = [t for t in range(9) if t != 4] + [4]
    K1 = 9 * Cin
    K1p = _round_up(K1, 8)          # pad contraction to a multiple of 8 sublanes
    Cp = K1p - 8 * Cin              # rows of the centre-tap (+ zero pad) tail block

    # --- conv1 im2col of x: channels-major, H*W on the lane axis ---
    x_pad = jnp.pad(x_nchw, ((0, 0), (0, 0), (1, 1), (1, 1)))
    taps = [x_pad[:, :, t // 3:t // 3 + H, t % 3:t % 3 + W] for t in order]
    x1 = jnp.stack(taps, axis=1).reshape(N, K1, HW)
    x1 = jnp.pad(x1, ((0, 0), (0, K1p - K1), (0, 0))).astype(jnp.float32)

    # --- weights: fold BN scales, flatten taps along the contraction, transpose ---
    w1t = params["w1"].reshape(9, Cin, Cmid)[jnp.array(order)].reshape(K1, Cmid)
    w1t = jnp.pad(w1t * s1[None, :], ((0, K1p - K1), (0, 0))).T        # (Cmid, K1p)
    w2t = (params["w2"].reshape(9 * Cmid, Cmid) * s2[None, :]).T       # (Cmid, 9*Cmid)
    w3t = (params["w3"].reshape(Cin, Cmid) * s3[None, :]).T            # (Cmid, Cin)
    w23 = jnp.concatenate(
        [w2t, w3t, jnp.zeros((Cmid, Cp - Cin), jnp.float32)], axis=1)  # (Cmid, 9*Cmid+Cp)

    b1c = b1.reshape(Cmid, 1)
    b23 = (b2 + b3).reshape(Cmid, 1)
    K2 = 9 * Cmid + Cp

    kernel = functools.partial(residual_block_kernel, H=H, W=W, Cin=Cin)

    out = pl.pallas_call(
        kernel,
        out_shape=jax.ShapeDtypeStruct((N, Cmid, HW), x_nchw.dtype),
        grid_spec=pltpu.PrefetchScalarGridSpec(
            num_scalar_prefetch=0,
            grid=(N,),
            in_specs=[
                pl.BlockSpec((1, K1p, HW), lambda n: (n, 0, 0)),
                pl.BlockSpec((Cmid, K1p), lambda n: (0, 0)),
                pl.BlockSpec((Cmid, K2), lambda n: (0, 0)),
                pl.BlockSpec((Cmid, 1), lambda n: (0, 0)),
                pl.BlockSpec((Cmid, 1), lambda n: (0, 0)),
            ],
            out_specs=pl.BlockSpec((1, Cmid, HW), lambda n: (n, 0, 0)),
        ),
        compiler_params=pltpu.CompilerParams(
            dimension_semantics=("parallel",),
            vmem_limit_bytes=32 * 1024 * 1024,
        ),
    )(x1, w1t, w23, b1c, b23)

    return out.reshape(N, Cmid, H, W)               # already NCHW


def ref_forward(x_nchw, params, eps=1e-5):
    """Pure-JAX reference (inference-mode BatchNorm)."""
    x = jnp.transpose(x_nchw, (0, 2, 3, 1))
    dn = ('NHWC', 'HWIO', 'NHWC')

    def bn(h, p):
        gamma, beta, mean, var = p
        return (h - mean) / jnp.sqrt(var + eps) * gamma + beta

    h = lax.conv_general_dilated(x, params["w1"], (1, 1), 'SAME', dimension_numbers=dn)
    h = jax.nn.relu(bn(h, params["bn1"]))
    h = lax.conv_general_dilated(h, params["w2"], (1, 1), 'SAME', dimension_numbers=dn)
    h = bn(h, params["bn2"])
    r = lax.conv_general_dilated(x, params["w3"], (1, 1), 'SAME', dimension_numbers=dn)
    r = bn(r, params["bn3"])
    out = jax.nn.relu(h + r)
    return jnp.transpose(out, (0, 3, 1, 2))


def make_params(key, cin, cmid):
    ks = jax.random.split(key, 6)

    def bn_params(k):
        k1, k2, k3, k4 = jax.random.split(k, 4)
        gamma = 1.0 + 0.1 * jax.random.normal(k1, (cmid,), jnp.float32)
        beta = 0.1 * jax.random.normal(k2, (cmid,), jnp.float32)
        mean = 0.1 * jax.random.normal(k3, (cmid,), jnp.float32)
        var = 1.0 + 0.1 * jax.random.uniform(k4, (cmid,), jnp.float32)
        return (gamma, beta, mean, var)

    return {
        "w1": 0.1 * jax.random.normal(ks[0], (3, 3, cin, cmid), jnp.float32),
        "w2": 0.1 * jax.random.normal(ks[1], (3, 3, cmid, cmid), jnp.float32),
        "w3": 0.1 * jax.random.normal(ks[2], (1, 1, cin, cmid), jnp.float32),
        "bn1": bn_params(ks[3]),
        "bn2": bn_params(ks[4]),
        "bn3": bn_params(ks[5]),
    }


if __name__ == "__main__":
    key = jax.random.PRNGKey(0)
    k_x, k_p = jax.random.split(key)

    N, Cin, Cmid, H, W = 2, 4, 8, 16, 16
    x = jax.random.normal(k_x, (N, Cin, H, W), jnp.float32)   # NCHW like PyTorch
    params = make_params(k_p, Cin, Cmid)

    out = jax.block_until_ready(residual_block(x, params))
    ref = jax.block_until_ready(ref_forward(x, params))
    np.testing.assert_allclose(np.asarray(out), np.asarray(ref), rtol=1e-4, atol=1e-4)

    print("KERNEL_OK")
</pallas_src>

<mosaic_0001>
module attributes {stable_mosaic.version = 11 : i64} {
  func.func @residual_block_kernel(%arg0: i32, %arg1: memref<1x40x256xf32, #tpu.memory_space<vmem>>, %arg2: memref<8x40xf32, #tpu.memory_space<vmem>>, %arg3: memref<8x80xf32, #tpu.memory_space<vmem>>, %arg4: memref<8x1xf32, #tpu.memory_space<vmem>>, %arg5: memref<8x1xf32, #tpu.memory_space<vmem>>, %arg6: memref<1x8x256xf32, #tpu.memory_space<vmem>>) attributes {dimension_semantics = [#tpu.dimension_semantics<parallel>], iteration_bounds = array<i64: 2>, scalar_prefetch = 0 : i64, scratch_operands = 0 : i64, tpu.core_type = #tpu.core_type<tc>, window_params = [{transform_indices = @transform_0, window_bounds = array<i64: 1, 40, 256>}, {pipeline_mode = #tpu.pipeline_mode<synchronous>, transform_indices = @transform_1, window_bounds = array<i64: 8, 40>}, {pipeline_mode = #tpu.pipeline_mode<synchronous>, transform_indices = @transform_2, window_bounds = array<i64: 8, 80>}, {pipeline_mode = #tpu.pipeline_mode<synchronous>, transform_indices = @transform_3, window_bounds = array<i64: 8, 1>}, {pipeline_mode = #tpu.pipeline_mode<synchronous>, transform_indices = @transform_4, window_bounds = array<i64: 8, 1>}, {transform_indices = @transform_5, window_bounds = array<i64: 1, 8, 256>}]} {
    %c0 = arith.constant 0 : index
    %c0_0 = arith.constant 0 : index
    %c0_1 = arith.constant 0 : index
    %0 = vector.load %arg1[%c0, %c0_0, %c0_1] : memref<1x40x256xf32, #tpu.memory_space<vmem>>, vector<1x40x256xf32>
    %1 = vector.shape_cast %0 : vector<1x40x256xf32> to vector<40x256xf32>
    %c0_2 = arith.constant 0 : index
    %c0_3 = arith.constant 0 : index
    %2 = vector.load %arg2[%c0_2, %c0_3] : memref<8x40xf32, #tpu.memory_space<vmem>>, vector<8x40xf32>
    %cst = arith.constant dense<0.000000e+00> : vector<8x256xf32>
    %3 = tpu.matmul %2, %1, %cst {dimension_numbers = #tpu.dot_dimension_numbers<[1], [0], [0], [1], [0, 0, 1, 1], [], []>} : vector<8x40xf32>, vector<40x256xf32>, vector<8x256xf32> -> vector<8x256xf32>
    %c0_4 = arith.constant 0 : index
    %c0_5 = arith.constant 0 : index
    %4 = vector.load %arg4[%c0_4, %c0_5] : memref<8x1xf32, #tpu.memory_space<vmem>>, vector<8x1xf32>
    %5 = vector.broadcast %4 : vector<8x1xf32> to vector<8x256xf32>
    %6 = arith.addf %3, %5 : vector<8x256xf32>
    %cst_6 = arith.constant 0.000000e+00 : f32
    %7 = vector.broadcast %cst_6 : f32 to vector<8x256xf32>
    %8 = arith.maximumf %6, %7 : vector<8x256xf32>
    %cst_7 = arith.constant 0.000000e+00 : f32
    %9 = vector.broadcast %cst_7 : f32 to vector<8x17xf32>
    %10 = tpu.concatenate %9, %8, %9 in 1 : vector<8x17xf32>, vector<8x256xf32>, vector<8x17xf32> -> vector<8x290xf32>
    %11 = tpu.iota {dimensions = array<i32: 1>} : vector<1x256xi32>
    %c16_i32 = arith.constant 16 : i32
    %c0_i32 = arith.constant 0 : i32
    %12 = arith.cmpi eq, %c16_i32, %c0_i32 : i32
    %c1_i32 = arith.constant 1 : i32
    %13 = arith.select %12, %c1_i32, %c16_i32 : i32
    %14 = vector.broadcast %13 : i32 to vector<1x256xi32>
    %15 = arith.remsi %11, %14 : vector<1x256xi32>
    %c0_i32_8 = arith.constant 0 : i32
    %16 = vector.broadcast %c0_i32_8 : i32 to vector<1x256xi32>
    %17 = arith.cmpi ne, %15, %16 : vector<1x256xi32>
    %c0_i32_9 = arith.constant 0 : i32
    %18 = vector.broadcast %c0_i32_9 : i32 to vector<1x256xi32>
    %19 = arith.cmpi slt, %15, %18 : vector<1x256xi32>
    %c0_i32_10 = arith.constant 0 : i32
    %20 = arith.cmpi slt, %13, %c0_i32_10 : i32
    %21 = vector.broadcast %20 : i1 to vector<1x256xi1>
    %22 = vector.broadcast %21 : vector<1x256xi1> to vector<1x256xi1>
    %23 = arith.xori %19, %22 : vector<1x256xi1>
    %24 = arith.andi %23, %17 : vector<1x256xi1>
    %25 = vector.broadcast %13 : i32 to vector<1x256xi32>
    %26 = arith.addi %15, %25 : vector<1x256xi32>
    %27 = arith.select %24, %26, %15 : vector<1x256xi1>, vector<1x256xi32>
    %28 = vector.extract_strided_slice %10 {offsets = [0, 0], sizes = [8, 256], strides = [1, 1]} : vector<8x290xf32> to vector<8x256xf32>
    %c0_i32_11 = arith.constant 0 : i32
    %29 = vector.broadcast %c0_i32_11 : i32 to vector<1x256xi32>
    %30 = arith.cmpi ne, %27, %29 : vector<1x256xi32>
    %cst_12 = arith.constant 0.000000e+00 : f32
    %31 = vector.shape_cast %30 : vector<1x256xi1> to vector<1x256xi1>
    %32 = vector.broadcast %31 : vector<1x256xi1> to vector<8x256xi1>
    %33 = vector.broadcast %cst_12 : f32 to vector<8x256xf32>
    %34 = arith.select %32, %28, %33 : vector<8x256xi1>, vector<8x256xf32>
    %35 = vector.extract_strided_slice %10 {offsets = [0, 1], sizes = [8, 256], strides = [1, 1]} : vector<8x290xf32> to vector<8x256xf32>
    %36 = vector.extract_strided_slice %10 {offsets = [0, 2], sizes = [8, 256], strides = [1, 1]} : vector<8x290xf32> to vector<8x256xf32>
    %c15_i32 = arith.constant 15 : i32
    %37 = vector.broadcast %c15_i32 : i32 to vector<1x256xi32>
    %38 = arith.cmpi ne, %27, %37 : vector<1x256xi32>
    %cst_13 = arith.constant 0.000000e+00 : f32
    %39 = vector.shape_cast %38 : vector<1x256xi1> to vector<1x256xi1>
    %40 = vector.broadcast %39 : vector<1x256xi1> to vector<8x256xi1>
    %41 = vector.broadcast %cst_13 : f32 to vector<8x256xf32>
    %42 = arith.select %40, %36, %41 : vector<8x256xi1>, vector<8x256xf32>
    %43 = vector.extract_strided_slice %10 {offsets = [0, 16], sizes = [8, 256], strides = [1, 1]} : vector<8x290xf32> to vector<8x256xf32>
    %c0_i32_14 = arith.constant 0 : i32
    %44 = vector.broadcast %c0_i32_14 : i32 to vector<1x256xi32>
    %45 = arith.cmpi ne, %27, %44 : vector<1x256xi32>
    %cst_15 = arith.constant 0.000000e+00 : f32
    %46 = vector.shape_cast %45 : vector<1x256xi1> to vector<1x256xi1>
    %47 = vector.broadcast %46 : vector<1x256xi1> to vector<8x256xi1>
    %48 = vector.broadcast %cst_15 : f32 to vector<8x256xf32>
    %49 = arith.select %47, %43, %48 : vector<8x256xi1>, vector<8x256xf32>
    %50 = vector.extract_strided_slice %10 {offsets = [0, 17], sizes = [8, 256], strides = [1, 1]} : vector<8x290xf32> to vector<8x256xf32>
    %51 = vector.extract_strided_slice %10 {offsets = [0, 18], sizes = [8, 256], strides = [1, 1]} : vector<8x290xf32> to vector<8x256xf32>
    %c15_i32_16 = arith.constant 15 : i32
    %52 = vector.broadcast %c15_i32_16 : i32 to vector<1x256xi32>
    %53 = arith.cmpi ne, %27, %52 : vector<1x256xi32>
    %cst_17 = arith.constant 0.000000e+00 : f32
    %54 = vector.shape_cast %53 : vector<1x256xi1> to vector<1x256xi1>
    %55 = vector.broadcast %54 : vector<1x256xi1> to vector<8x256xi1>
    %56 = vector.broadcast %cst_17 : f32 to vector<8x256xf32>
    %57 = arith.select %55, %51, %56 : vector<8x256xi1>, vector<8x256xf32>
    %58 = vector.extract_strided_slice %10 {offsets = [0, 32], sizes = [8, 256], strides = [1, 1]} : vector<8x290xf32> to vector<8x256xf32>
    %c0_i32_18 = arith.constant 0 : i32
    %59 = vector.broadcast %c0_i32_18 : i32 to vector<1x256xi32>
    %60 = arith.cmpi ne, %27, %59 : vector<1x256xi32>
    %cst_19 = arith.constant 0.000000e+00 : f32
    %61 = vector.shape_cast %60 : vector<1x256xi1> to vector<1x256xi1>
    %62 = vector.broadcast %61 : vector<1x256xi1> to vector<8x256xi1>
    %63 = vector.broadcast %cst_19 : f32 to vector<8x256xf32>
    %64 = arith.select %62, %58, %63 : vector<8x256xi1>, vector<8x256xf32>
    %65 = vector.extract_strided_slice %10 {offsets = [0, 33], sizes = [8, 256], strides = [1, 1]} : vector<8x290xf32> to vector<8x256xf32>
    %66 = vector.extract_strided_slice %10 {offsets = [0, 34], sizes = [8, 256], strides = [1, 1]} : vector<8x290xf32> to vector<8x256xf32>
    %c15_i32_20 = arith.constant 15 : i32
    %67 = vector.broadcast %c15_i32_20 : i32 to vector<1x256xi32>
    %68 = arith.cmpi ne, %27, %67 : vector<1x256xi32>
    %cst_21 = arith.constant 0.000000e+00 : f32
    %69 = vector.shape_cast %68 : vector<1x256xi1> to vector<1x256xi1>
    %70 = vector.broadcast %69 : vector<1x256xi1> to vector<8x256xi1>
    %71 = vector.broadcast %cst_21 : f32 to vector<8x256xf32>
    %72 = arith.select %70, %66, %71 : vector<8x256xi1>, vector<8x256xf32>
    %73 = vector.extract_strided_slice %1 {offsets = [32, 0], sizes = [8, 256], strides = [1, 1]} : vector<40x256xf32> to vector<8x256xf32>
    %74 = tpu.concatenate %34, %35, %42, %49, %50, %57, %64, %65, %72, %73 in 0 : vector<8x256xf32>, vector<8x256xf32>, vector<8x256xf32>, vector<8x256xf32>, vector<8x256xf32>, vector<8x256xf32>, vector<8x256xf32>, vector<8x256xf32>, vector<8x256xf32>, vector<8x256xf32> -> vector<80x256xf32>
    %c0_22 = arith.constant 0 : index
    %c0_23 = arith.constant 0 : index
    %75 = vector.load %arg3[%c0_22, %c0_23] : memref<8x80xf32, #tpu.memory_space<vmem>>, vector<8x80xf32>
    %cst_24 = arith.constant dense<0.000000e+00> : vector<8x256xf32>
    %76 = tpu.matmul %75, %74, %cst_24 {dimension_numbers = #tpu.dot_dimension_numbers<[1], [0], [0], [1], [0, 0, 1, 1], [], []>} : vector<8x80xf32>, vector<80x256xf32>, vector<8x256xf32> -> vector<8x256xf32>
    %c0_25 = arith.constant 0 : index
    %c0_26 = arith.constant 0 : index
    %77 = vector.load %arg5[%c0_25, %c0_26] : memref<8x1xf32, #tpu.memory_space<vmem>>, vector<8x1xf32>
    %78 = vector.broadcast %77 : vector<8x1xf32> to vector<8x256xf32>
    %79 = arith.addf %76, %78 : vector<8x256xf32>
    %cst_27 = arith.constant 0.000000e+00 : f32
    %80 = vector.broadcast %cst_27 : f32 to vector<8x256xf32>
    %81 = arith.maximumf %79, %80 : vector<8x256xf32>
    %c0_28 = arith.constant 0 : index
    %c0_29 = arith.constant 0 : index
    %c0_30 = arith.constant 0 : index
    %82 = vector.load %arg6[%c0_28, %c0_29, %c0_30] : memref<1x8x256xf32, #tpu.memory_space<vmem>>, vector<1x8x256xf32>
    %83 = vector.shape_cast %82 : vector<1x8x256xf32> to vector<8x256xf32>
    %84 = vector.shape_cast %81 : vector<8x256xf32> to vector<1x8x256xf32>
    tpu.vector_store %arg6[%c0_28, %c0_29, %c0_30], %84 {strides = array<i32>} : memref<1x8x256xf32, #tpu.memory_space<vmem>>, vector<1x8x256xf32>,
    return
  }
  func.func @transform_0(%arg0: i32) -> (i32, i32, i32) {
    %c0_i32 = arith.constant 0 : i32
    %c0_i32_0 = arith.constant 0 : i32
    %c0_i32_1 = arith.constant 0 : i32
    return %arg0, %c0_i32, %c0_i32_0 : i32, i32, i32
  }
  func.func @transform_1(%arg0: i32) -> (i32, i32) {
    %c0_i32 = arith.constant 0 : i32
    %c0_i32_0 = arith.constant 0 : i32
    %c0_i32_1 = arith.constant 0 : i32
    return %c0_i32, %c0_i32_0 : i32, i32
  }
  func.func @transform_2(%arg0: i32) -> (i32, i32) {
    %c0_i32 = arith.constant 0 : i32
    %c0_i32_0 = arith.constant 0 : i32
    %c0_i32_1 = arith.constant 0 : i32
    return %c0_i32, %c0_i32_0 : i32, i32
  }
  func.func @transform_3(%arg0: i32) -> (i32, i32) {
    %c0_i32 = arith.constant 0 : i32
    %c0_i32_0 = arith.constant 0 : i32
    %c0_i32_1 = arith.constant 0 : i32
    return %c0_i32, %c0_i32_0 : i32, i32
  }
  func.func @transform_4(%arg0: i32) -> (i32, i32) {
    %c0_i32 = arith.constant 0 : i32
    %c0_i32_0 = arith.constant 0 : i32
    %c0_i32_1 = arith.constant 0 : i32
    return %c0_i32, %c0_i32_0 : i32, i32
  }
  func.func @transform_5(%arg0: i32) -> (i32, i32, i32) {
    %c0_i32 = arith.constant 0 : i32
    %c0_i32_0 = arith.constant 0 : i32
    %c0_i32_1 = arith.constant 0 : i32
    return %arg0, %c0_i32, %c0_i32_0 : i32, i32, i32
  }
}

</mosaic_0001>

<llo_original>
// kernel: tpu_custom_call.1
$region0: #{tpu_custom_call.1}
  #allocation0 [shape = 'u32[]', space=smem, size = 0x4, offset = 0x4, fixed_abs, tag = 'smem constant byte address 0x4 - core index']
  #allocation1 [shape = 'u32[144,128]{1,0:T(1,128)}', space=vmem, size = 0x12000, scoped, tag = 'internal scratch']
  %s0 = inlined_call_operand.hbm [shape: f32[2,40,256], index: 0, kind: input, shape index: {}]
  %s1 = inlined_call_operand.vmem [shape: f32[8,40], index: 1, kind: input, shape index: {}]
  %s2 = inlined_call_operand.vmem [shape: f32[8,80], index: 2, kind: input, shape index: {}]
  %s3 = inlined_call_operand.vmem [shape: f32[8,1], index: 3, kind: input, shape index: {}]
  %s4 = inlined_call_operand.vmem [shape: f32[8,1], index: 4, kind: input, shape index: {}]
  %s5 = inlined_call_operand.hbm [shape: f32[2,8,256], index: 5, kind: output, shape index: {}]
  %s6 = sld [smem:[#allocation0]]
  $region57: #{tpu_custom_call.1} parent=0
    _
  %s8 = ssub.s32 1, %s6
  %s9 = scalar_select 0, %s8, %s6
  $region1: #{tpu_custom_call.1} parent=0
    #allocation2 [shape = 'u8[81920]{0}', space=vmem, size = 0x14000, scoped, tag = 'input window, operand 0']
    #allocation3 [shape = 's32[2]{0}', space=sflag, size = 0x8, scoped, tag = 'scoped memory for tpu_custom_call.1']
    #allocation4 [shape = 's32[2]{0}', space=sflag, size = 0x8, scoped, tag = 'scoped memory for tpu_custom_call.1']
    #allocation5 [shape = 'u8[16384]{0}', space=vmem, size = 0x4000, scoped, tag = 'output window, operand 0']
    %10 = vsyncpa [#allocation3], 0
    %s11 = scalar_lea.sflag [#allocation3], 1
    %12 = vsyncpa %s11, 0
    %13 = vsyncpa [#allocation4], 0
    %s14 = scalar_lea.sflag [#allocation4], 1
    %15 = vsyncpa %s14, 0
    loop: start=0, step=1, limit=4
    $region2: #{tpu_custom_call.1} parent=1 // loop_pre_header
      _
    $region3: #{tpu_custom_call.1} parent=1 // loop_header
      %s17 = sphi 0, %s21
      %p18 = scmp.ge.s32.totalorder %s17, 4
      %s27 = sphi 0, %s29
      %s30 = sphi 0, %s27
      %s31 = sphi 0, %s30
      %s47 = sphi 0, %s31
      %s51 = sphi 0, %s51
      %s53 = sphi 0, %s51
      %s54 = sphi 0, %s53
      %s68 = sphi 0, %s54
      %s72 = sphi 0, %s72
      %s74 = sphi 0, %s72
      %s75 = sphi 0, %s74
      %s89 = sphi 0, %s75
      %s93 = sphi 0, %s93
      %s95 = sphi 0, %s93
      %s96 = sphi 0, %s95
      %s110 = sphi 0, %s96
      %s114 = sphi 0, %s114
      %s116 = sphi 0, %s114
      %s117 = sphi 0, %s116
      %s131 = sphi 0, %s117
      %s137 = sphi 0, %s139
      %s140 = sphi 0, %s137
      %s141 = sphi 0, %s140
      %s157 = sphi 0, %s141
    $region4: #{tpu_custom_call.1} parent=1 // loop_header_branch
      %20 = sbr.rel (%p18) target = $region8
    $region5: #{tpu_custom_call.1} parent=1 // loop_body
      %s22 = ssub.s32 %s17, 1
      %s23 = ssub.s32 %s17, 2
      %s24 = sadd.s32 %s17, 1
      %s25 = ssub.s32 %s17, %s24
      %p26 = scmp.eq.s32.totalorder %s25, 0
      %s28 = sadd.s32 %s27, 1
      %s29 = scalar_select %p26, %s27, %s28
      %p32 = pneg %p26
      %p33 = scmp.eq.s32.totalorder %s17, 1
      %p34 = por %p32, %p33
      %p35 = scmp.ne.s32.totalorder %s27, %s30
      %p36 = scmp.eq.s32.totalorder %s17, 0
      %p37 = por %p35, %p36
      %p38 = scmp.ne.s32.totalorder %s27, %s30
      %p39 = scmp.eq.s32.totalorder %s22, 1
      %p40 = por %p38, %p39
      %p41 = scmp.ne.s32.totalorder %s30, %s31
      %p42 = scmp.eq.s32.totalorder %s22, 0
      %p43 = por %p41, %p42
      %p44 = scmp.ne.s32.totalorder %s30, %s31
      %p45 = scmp.eq.s32.totalorder %s23, 1
      %p46 = por %p44, %p45
      %p48 = scmp.ne.s32.totalorder %s31, %s47
      %p49 = scmp.eq.s32.totalorder %s23, 0
      %p50 = por %p48, %p49
      %s52 = sadd.s32 %s51, 1
      %p55 = scmp.eq.s32.totalorder %s17, 1
      %p56 = scmp.ne.s32.totalorder %s51, %s53
      %p57 = scmp.eq.s32.totalorder %s17, 0
      %p58 = por %p56, %p57
      %p59 = scmp.ne.s32.totalorder %s51, %s53
      %p60 = scmp.eq.s32.totalorder %s22, 1
      %p61 = por %p59, %p60
      %p62 = scmp.ne.s32.totalorder %s53, %s54
      %p63 = scmp.eq.s32.totalorder %s22, 0
      %p64 = por %p62, %p63
      %p65 = scmp.ne.s32.totalorder %s53, %s54
      %p66 = scmp.eq.s32.totalorder %s23, 1
      %p67 = por %p65, %p66
      %p69 = scmp.ne.s32.totalorder %s54, %s68
      %p70 = scmp.eq.s32.totalorder %s23, 0
      %p71 = por %p69, %p70
      %s73 = sadd.s32 %s72, 1
      %p76 = scmp.eq.s32.totalorder %s17, 1
      %p77 = scmp.ne.s32.totalorder %s72, %s74
      %p78 = scmp.eq.s32.totalorder %s17, 0
      %p79 = por %p77, %p78
      %p80 = scmp.ne.s32.totalorder %s72, %s74
      %p81 = scmp.eq.s32.totalorder %s22, 1
      %p82 = por %p80, %p81
      %p83 = scmp.ne.s32.totalorder %s74, %s75
      %p84 = scmp.eq.s32.totalorder %s22, 0
      %p85 = por %p83, %p84
      %p86 = scmp.ne.s32.totalorder %s74, %s75
      %p87 = scmp.eq.s32.totalorder %s23, 1
      %p88 = por %p86, %p87
      %p90 = scmp.ne.s32.totalorder %s75, %s89
      %p91 = scmp.eq.s32.totalorder %s23, 0
      %p92 = por %p90, %p91
      %s94 = sadd.s32 %s93, 1
      %p97 = scmp.eq.s32.totalorder %s17, 1
      %p98 = scmp.ne.s32.totalorder %s93, %s95
      %p99 = scmp.eq.s32.totalorder %s17, 0
      %p100 = por %p98, %p99
      %p101 = scmp.ne.s32.totalorder %s93, %s95
      %p102 = scmp.eq.s32.totalorder %s22, 1
      %p103 = por %p101, %p102
      %p104 = scmp.ne.s32.totalorder %s95, %s96
      %p105 = scmp.eq.s32.totalorder %s22, 0
      %p106 = por %p104, %p105
      %p107 = scmp.ne.s32.totalorder %s95, %s96
      %p108 = scmp.eq.s32.totalorder %s23, 1
      %p109 = por %p107, %p108
      %p111 = scmp.ne.s32.totalorder %s96, %s110
      %p112 = scmp.eq.s32.totalorder %s23, 0
      %p113 = por %p111, %p112
      %s115 = sadd.s32 %s114, 1
      %p118 = scmp.eq.s32.totalorder %s17, 1
      %p119 = scmp.ne.s32.totalorder %s114, %s116
      %p120 = scmp.eq.s32.totalorder %s17, 0
      %p121 = por %p119, %p120
      %p122 = scmp.ne.s32.totalorder %s114, %s116
      %p123 = scmp.eq.s32.totalorder %s22, 1
      %p124 = por %p122, %p123
      %p125 = scmp.ne.s32.totalorder %s116, %s117
      %p126 = scmp.eq.s32.totalorder %s22, 0
      %p127 = por %p125, %p126
      %p128 = scmp.ne.s32.totalorder %s116, %s117
      %p129 = scmp.eq.s32.totalorder %s23, 1
      %p130 = por %p128, %p129
      %p132 = scmp.ne.s32.totalorder %s117, %s131
      %p133 = scmp.eq.s32.totalorder %s23, 0
      %p134 = por %p132, %p133
      %s135 = ssub.s32 %s17, %s24
      %p136 = scmp.eq.s32.totalorder %s135, 0
      %s138 = sadd.s32 %s137, 1
      %s139 = scalar_select %p136, %s137, %s138
      %p142 = pneg %p136
      %p143 = scmp.eq.s32.totalorder %s17, 1
      %p144 = por %p142, %p143
      %p145 = scmp.ne.s32.totalorder %s137, %s140
      %p146 = scmp.eq.s32.totalorder %s17, 0
      %p147 = por %p145, %p146
      %p148 = scmp.ne.s32.totalorder %s137, %s140
      %p149 = scmp.eq.s32.totalorder %s22, 1
      %p150 = por %p148, %p149
      %p151 = scmp.ne.s32.totalorder %s140, %s141
      %p152 = scmp.eq.s32.totalorder %s22, 0
      %p153 = por %p151, %p152
      %p154 = scmp.ne.s32.totalorder %s140, %s141
      %p155 = scmp.eq.s32.totalorder %s23, 1
      %p156 = por %p154, %p155
      %p158 = scmp.ne.s32.totalorder %s141, %s157
      %p159 = scmp.eq.s32.totalorder %s23, 0
      %p160 = por %p158, %p159
      %p161 = scmp.le.s32.totalorder 1, %s17
      %p162 = scmp.lt.s32.totalorder %s17, 3
      %p163 = pnand %p161, %p162
      %p164 = pneg %p163
      // Predicated region
      $region9: #{tpu_custom_call.1} parent=5 // pred_check
        _
      $region10: #{tpu_custom_call.1} parent=5 // pred_check_branch
        %166 = sbr.rel (%p163) target = $region12
      $region11: #{tpu_custom_call.1} parent=5 // pred_region
        %s167 = ssub.s32 %s17, 1
        // Predicated region
        $region13: #{tpu_custom_call.1} parent=11 // pred_check
          %p168 = pneg %p64
        $region14: #{tpu_custom_call.1} parent=11 // pred_check_branch
          %170 = sbr.rel (%p168) target = $region16
        $region15: #{tpu_custom_call.1} parent=11 // pred_region
          _
        $region16: #{tpu_custom_call.1} parent=11 // pred_fallthru
          _
        // Predicated region
        $region17: #{tpu_custom_call.1} parent=11 // pred_check
          %p171 = pneg %p85
        $region18: #{tpu_custom_call.1} parent=11 // pred_check_branch
          %173 = sbr.rel (%p171) target = $region20
        $region19: #{tpu_custom_call.1} parent=11 // pred_region
          _
        $region20: #{tpu_custom_call.1} parent=11 // pred_fallthru
          _
        // Predicated region
        $region21: #{tpu_custom_call.1} parent=11 // pred_check
          %p174 = pneg %p106
        $region22: #{tpu_custom_call.1} parent=11 // pred_check_branch
          %176 = sbr.rel (%p174) target = $region24
        $region23: #{tpu_custom_call.1} parent=11 // pred_region
          _
        $region24: #{tpu_custom_call.1} parent=11 // pred_fallthru
          _
        // Predicated region
        $region25: #{tpu_custom_call.1} parent=11 // pred_check
          %p177 = pneg %p127
        $region26: #{tpu_custom_call.1} parent=11 // pred_check_branch
          %179 = sbr.rel (%p177) target = $region28
        $region27: #{tpu_custom_call.1} parent=11 // pred_region
          _
        $region28: #{tpu_custom_call.1} parent=11 // pred_fallthru
          _
      $region12: #{tpu_custom_call.1} parent=5 // pred_fallthru
        _
      %p180 = scmp.lt.s32.totalorder %s17, 2
      // Predicated region
      $region29: #{tpu_custom_call.1} parent=5 // pred_check
        %p181 = pneg %p180
      $region30: #{tpu_custom_call.1} parent=5 // pred_check_branch
        %183 = sbr.rel (%p181) target = $region32
      $region31: #{tpu_custom_call.1} parent=5 // pred_region
        // Predicated region
        $region33: #{tpu_custom_call.1} parent=31 // pred_check
          %p184 = pneg %p37
        $region34: #{tpu_custom_call.1} parent=31 // pred_check_branch
          %186 = sbr.rel (%p184) target = $region36
        $region35: #{tpu_custom_call.1} parent=31 // pred_region
          %s187 = sand.u32 %s27, 1
          %s188 = scalar_lea.sflag [#allocation3], %s187
          %s189 = sand.u32 %s27, 1
          %s190 = smul.addr %s189, 80
          %s191 = scalar_lea.vmem [#allocation2], %s190
          %s193 = ssub.s32 1280, 1280
          %194 = vsyncadd %s188, %s193
          %s195 = smul.addr %s17, 10
          %s196 = smul.addr %s195, 128
          %s197 = scalar_lea.hbm %s0, %s196
          %s198 = sshll.u32 %s191, 4
          %s199 = int_to_ptr.vmem [resolvable:$true] %s198
          %204 = dma.hbm_to_vmem [thread:$0]  %s197, 1280, %s199, %s188, 256, 256, 16
        $region36: #{tpu_custom_call.1} parent=31 // pred_fallthru
          _
      $region32: #{tpu_custom_call.1} parent=5 // pred_fallthru
        _
      %p205 = scmp.le.s32.totalorder 1, %s17
      %p206 = scmp.lt.s32.totalorder %s17, 3
      %p207 = pnand %p205, %p206
      %p208 = pneg %p207
      // Predicated region
      $region37: #{tpu_custom_call.1} parent=5 // pred_check
        _
      $region38: #{tpu_custom_call.1} parent=5 // pred_check_branch
        %210 = sbr.rel (%p207) target = $region40
      $region39: #{tpu_custom_call.1} parent=5 // pred_region
        %s211 = ssub.s32 %s17, 1
        %s212 = sand.u32 %s30, 1
        %s213 = scalar_lea.sflag [#allocation3], %s212
        %s214 = sand.u32 %s30, 1
        %s215 = smul.addr %s214, 80
        %s216 = scalar_lea.vmem [#allocation2], %s215
        // Predicated region
        $region41: #{tpu_custom_call.1} parent=39 // pred_check
          %p217 = pneg %p43
        $region42: #{tpu_custom_call.1} parent=39 // pred_check_branch
          %219 = sbr.rel (%p217) target = $region44
        $region43: #{tpu_custom_call.1} parent=39 // pred_region
          %220 = dma.done %s213, 1280
        $region44: #{tpu_custom_call.1} parent=39 // pred_fallthru
          _
        %s221 = sand.u32 %s30, 1
        %s222 = scalar_lea.sflag [#allocation3], %s221
        %s223 = sand.u32 %s30, 1
        %s224 = smul.addr %s223, 80
        %s225 = scalar_lea.vmem [#allocation2], %s224
        %p226 = pneg %p43
        %p227 = pneg %p40
        %p228 = pneg %p64
        %p229 = pneg %p61
        %p230 = pneg %p85
        %p231 = pneg %p82
        %p232 = pneg %p106
        %p233 = pneg %p103
        %p234 = pneg %p127
        %p235 = pneg %p124
        %p236 = pneg %p153
        %p237 = pneg %p150
        %s238 = sand.u32 %s140, 1
        %s239 = scalar_lea.sflag [#allocation4], %s238
        %s240 = sand.u32 %s140, 1
        %s241 = smul.addr %s240, 16
        %s242 = scalar_lea.vmem [#allocation5], %s241
        %v243 = vld [vmem:[%s216] sm:$0xff]
        %v244 = vld [vmem:[%s216 + $0x8] sm:$0xff]
        %v245 = vld [vmem:[%s216 + $0x10] sm:$0xff]
        %v246 = vld [vmem:[%s216 + $0x18] sm:$0xff]
        %v247 = vld [vmem:[%s216 + $0x20] sm:$0xff]
        %v248 = vld [vmem:[%s216 + $0x28] sm:$0xff]
        %v249 = vld [vmem:[%s216 + $0x30] sm:$0xff]
        %v250 = vld [vmem:[%s216 + $0x38] sm:$0xff]
        %v251 = vld [vmem:[%s216 + $0x40] sm:$0xff]
        %v252 = vld [vmem:[%s216 + $0x48] sm:$0xff]
        %v253 = vld [vmem:[%s1] sm:$0xff]
        %v254 = vld [vmem:[%s3] sm:$0xff]
        %256 = vset.pattern.permute.xlu0 0
        %257 = vperm.xlu0 %256, %v254
        %v258 = vpop.permute.xlu0 %257
        %vm260 = vcmask 326656
        %v262 = vsel %vm260, %v253, 0
        %264 = vmatprep.subr.mxu0 0.0
        %265 = vmatpush1.msra.mxu0 0.0
        %266 = vmatprep.subr.mxu0 0.0
        %267 = vmatpush1.msra.mxu0 0.0
        %268 = vmatprep.subr.mxu0 0.0
        %269 = vmatpush1.msra.mxu0 0.0
        %270 = vmatprep.subr.mxu0 0.0
        %271 = vmatpush1.msra.mxu0 0.0
        %272 = vmatprep.subr.mxu0 0.0
        %273 = vmatpush1.msra.mxu0 0.0
        %274 = vmatprep.subr.mxu0 0.0
        %275 = vmatpush1.msra.mxu0 0.0
        %276 = vmatprep.subr.mxu0 0.0
        %277 = vmatpush1.msra.mxu0 0.0
        %278 = vmatprep.subr.mxu0 0.0
        %279 = vmatpush1.msra.mxu0 0.0
        %280 = vmatprep.subr.mxu0 0.0
        %281 = vmatpush1.msra.mxu0 0.0
        %282 = vmatprep.subr.mxu0 0.0
        %283 = vmatpush1.msra.mxu0 0.0
        %284 = vmatprep.subr.mxu0 0.0
        %285 = vmatpush1.msra.mxu0 0.0
        %286 = vmatprep.subr.mxu0 %v252
        %287 = vmatpush1.msra.mxu0 %v251
        %288 = vmatprep.subr.mxu0 %v250
        %289 = vmatpush1.msra.mxu0 %v249
        %290 = vmatprep.subr.mxu0 %v248
        %291 = vmatpush1.msra.mxu0 %v247
        %292 = vmatprep.subr.mxu0 %v246
        %293 = vmatpush1.msra.mxu0 %v245
        %294 = vmatprep.subr.mxu0 %v244
        %295 = vmatpush1.msra.mxu0 %v243
        %296 = vmatprep.subr.mxu0 0.0
        %297 = vmatpush2.msra.mxu0 0.0
        %298 = vmatprep.subr.mxu0 0.0
        %299 = vmatpush2.msra.mxu0 0.0
        %300 = vmatprep.subr.mxu0 0.0
        %301 = vmatpush2.msra.mxu0 0.0
        %302 = vmatprep.subr.mxu0 0.0
        %303 = vmatpush2.msra.mxu0 0.0
        %304 = vmatprep.subr.mxu0 0.0
        %305 = vmatpush2.msra.mxu0 0.0
        %306 = vmatprep.subr.mxu0 0.0
        %307 = vmatpush2.msra.mxu0 0.0
        %308 = vmatprep.subr.mxu0 0.0
        %309 = vmatpush2.msra.mxu0 0.0
        %310 = vmatprep.subr.mxu0 0.0
        %311 = vmatpush2.msra.mxu0 0.0
        %312 = vmatprep.subr.mxu0 0.0
        %313 = vmatpush2.msra.mxu0 0.0
        %314 = vmatprep.subr.mxu0 0.0
        %315 = vmatpush2.msra.mxu0 0.0
        %316 = vmatprep.subr.mxu0 0.0
        %317 = vmatpush2.msra.mxu0 0.0
        %318 = vmatprep.subr.mxu0 0.0
        %319 = vmatpush2.msra.mxu0 0.0
        %320 = vmatprep.subr.mxu0 0.0
        %321 = vmatpush2.msra.mxu0 0.0
        %322 = vmatprep.subr.mxu0 0.0
        %323 = vmatpush2.msra.mxu0 0.0
        %324 = vmatprep.subr.mxu0 0.0
        %325 = vmatpush2.msra.mxu0 0.0
        %326 = vmatprep.subr.mxu0 0.0
        %327 = vmatpush2.msra.mxu0 0.0
        %328 = vmatprep.mubr.f32.mxu0 0.0
        %329 = vmatmul.mubr.f32.gmra.mxu0 %v262
        %v330 = vpop.f32.mrf.mxu0
        %v331 = vadd.f32 %v258, %v330
        %v332 = vpop.f32.mrf.mxu0
        %v333 = vadd.f32 %v258, %v332
        %334 = vdwg.mxu0
        %v335 = vmax.f32 %v331, 0.0
        %v336 = vmax.f32 %v333, 0.0
        %339 = vrot.lane.b32.xlu0 %v335, 17
        %v340 = vpop.permute.xlu0 %339
        %341 = vrot.lane.b32.xlu0 %v336, 17
        %v342 = vpop.permute.xlu0 %341
        %vm343 = vcmask 138240
        %v344 = vsel %vm343, %v340, %v342
        %v348 = vsel %vm343, 0.0, %v340
        %v349 = vsel %vm343, %v342, 0.0
        %v350 = vlaneseq
        %v351 = vand.u32 %v350, 127
        %v352 = vadd.s32 %v351, 128
        %vm353 = vcmp.lt.s32.totalorder %v351, 0
        %v354 = vsub.s32 0, %v351
        %v355 = vsel %vm353, %v354, %v351
        %v356 = vshrl.u32 %v355, 4
        %v357 = vand.u32 %v355, 15
        %v358 = vsub.s32 0, %v357
        %v359 = vsel %vm353, %v358, %v357
        %vm360 = vcmp.lt.s32.totalorder %v352, 0
        %v361 = vsub.s32 0, %v352
        %v362 = vsel %vm360, %v361, %v352
        %v363 = vshrl.u32 %v362, 4
        %v364 = vand.u32 %v362, 15
        %v365 = vsub.s32 0, %v364
        %v366 = vsel %vm360, %v365, %v364
        %vm367 = vcmp.ne.s32.totalorder %v359, 0
        %vm368 = vcmp.ne.s32.totalorder %v366, 0
        %vm369 = vcmp.lt.s32.totalorder %v359, 0
        %vm370 = vcmp.lt.s32.totalorder %v366, 0
        %vm371 = vmand %vm369, %vm367
        %vm372 = vmand %vm370, %vm368
        %v373 = vadd.s32 %v359, 16
        %v374 = vadd.s32 %v366, 16
        %v375 = vsel %vm371, %v373, %v359
        %v376 = vsel %vm372, %v374, %v366
        %vm377 = vcmp.ne.s32.totalorder %v375, 0
        %vm378 = vcmp.ne.s32.totalorder %v376, 0
        %v379 = vsel %vm377, 1, 0
        %v380 = vsel %vm378, 1, 0
        %vm381 = vcmp.eq.s32.totalorder %v379, 1
        %vm382 = vcmp.eq.s32.totalorder %v380, 1
        %v383 = vsel %vm381, %v348, 0.0
        %v384 = vsel %vm382, %v344, 0.0
        %vm385 = vcmp.ne.s32.totalorder %v375, 15
        %vm386 = vcmp.ne.s32.totalorder %v376, 15
        %v387 = vsel %vm385, 1, 0
        %v388 = vsel %vm386, 1, 0
        %vm389 = vcmp.eq.s32.totalorder %v387, 1
        %vm390 = vcmp.eq.s32.totalorder %v388, 1
        %393 = vrot.lane.b32.xlu0 %v348, 126
        %v394 = vpop.permute.xlu0 %393
        %395 = vrot.lane.b32.xlu0 %v344, 126
        %v396 = vpop.permute.xlu0 %395
        %397 = vrot.lane.b32.xlu0 %v349, 126
        %v398 = vpop.permute.xlu0 %397
        %vm399 = vcmask 1031168
        %v400 = vsel %vm399, %v394, %v396
        %v401 = vsel %vm399, %v396, %v398
        %v404 = vsel %vm389, %v400, 0.0
        %v405 = vsel %vm390, %v401, 0.0
        %406 = vrot.lane.b32.xlu0 %v348, 112
        %v407 = vpop.permute.xlu0 %406
        %408 = vrot.lane.b32.xlu0 %v344, 112
        %v409 = vpop.permute.xlu0 %408
        %410 = vrot.lane.b32.xlu0 %v349, 112
        %v411 = vpop.permute.xlu0 %410
        %vm412 = vcmask 916480
        %v413 = vsel %vm412, %v407, %v409
        %v414 = vsel %vm412, %v409, %v411
        %v417 = vsel %vm381, %v413, 0.0
        %v418 = vsel %vm382, %v414, 0.0
        %419 = vrot.lane.b32.xlu0 %v348, 110
        %v420 = vpop.permute.xlu0 %419
        %421 = vrot.lane.b32.xlu0 %v344, 110
        %v422 = vpop.permute.xlu0 %421
        %423 = vrot.lane.b32.xlu0 %v349, 110
        %v424 = vpop.permute.xlu0 %423
        %vm425 = vcmask 900096
        %v426 = vsel %vm425, %v420, %v422
        %v427 = vsel %vm425, %v422, %v424
        %v430 = vsel %vm389, %v426, 0.0
        %v431 = vsel %vm390, %v427, 0.0
        %432 = vrot.lane.b32.xlu0 %v348, 96
        %v433 = vpop.permute.xlu0 %432
        %434 = vrot.lane.b32.xlu0 %v344, 96
        %v435 = vpop.permute.xlu0 %434
        %436 = vrot.lane.b32.xlu0 %v349, 96
        %v437 = vpop.permute.xlu0 %436
        %vm438 = vcmask 785408
        %v439 = vsel %vm438, %v433, %v435
        %v440 = vsel %vm438, %v435, %v437
        %v443 = vsel %vm381, %v439, 0.0
        %v444 = vsel %vm382, %v440, 0.0
        %445 = vrot.lane.b32.xlu0 %v348, 94
        %v446 = vpop.permute.xlu0 %445
        %447 = vrot.lane.b32.xlu0 %v344, 94
        %v448 = vpop.permute.xlu0 %447
        %449 = vrot.lane.b32.xlu0 %v349, 94
        %v450 = vpop.permute.xlu0 %449
        %vm451 = vcmask 769024
        %v452 = vsel %vm451, %v446, %v448
        %v453 = vsel %vm451, %v448, %v450
        %v456 = vsel %vm389, %v452, 0.0
        %v457 = vsel %vm390, %v453, 0.0
        %458 = vrot.lane.b32.xlu0 %v348, 127
        %v459 = vpop.permute.xlu0 %458
        %460 = vrot.lane.b32.xlu0 %v344, 127
        %v461 = vpop.permute.xlu0 %460
        %462 = vrot.lane.b32.xlu0 %v349, 127
        %v463 = vpop.permute.xlu0 %462
        %vm464 = vcmask 1039360
        %v465 = vsel %vm464, %v459, %v461
        %v466 = vsel %vm464, %v461, %v463
        %469 = vrot.lane.b32.xlu0 %v348, 111
        %v470 = vpop.permute.xlu0 %469
        %471 = vrot.lane.b32.xlu0 %v344, 111
        %v472 = vpop.permute.xlu0 %471
        %473 = vrot.lane.b32.xlu0 %v349, 111
        %v474 = vpop.permute.xlu0 %473
        %vm475 = vcmask 908288
        %v476 = vsel %vm475, %v470, %v472
        %v477 = vsel %vm475, %v472, %v474
        %480 = vrot.lane.b32.xlu0 %v348, 95
        %v481 = vpop.permute.xlu0 %480
        %482 = vrot.lane.b32.xlu0 %v344, 95
        %v483 = vpop.permute.xlu0 %482
        %484 = vrot.lane.b32.xlu0 %v349, 95
        %v485 = vpop.permute.xlu0 %484
        %vm486 = vcmask 777216
        %v487 = vsel %vm486, %v481, %v483
        %v488 = vsel %vm486, %v483, %v485
        %v491 = vld [vmem:[%s2] sm:$0xff]
        %v492 = vld [vmem:[%s4] sm:$0xff]
        %494 = vset.pattern.permute.xlu0 0
        %495 = vperm.xlu0 %494, %v492
        %v496 = vpop.permute.xlu0 %495
        %vm498 = vcmask 654336
        %v500 = vsel %vm498, %v491, 0
        %502 = vmatprep.subr.mxu0 0.0
        %503 = vmatpush1.msra.mxu0 0.0
        %504 = vmatprep.subr.mxu0 0.0
        %505 = vmatpush1.msra.mxu0 0.0
        %506 = vmatprep.subr.mxu0 0.0
        %507 = vmatpush1.msra.mxu0 0.0
        %508 = vmatprep.subr.mxu0 0.0
        %509 = vmatpush1.msra.mxu0 0.0
        %510 = vmatprep.subr.mxu0 0.0
        %511 = vmatpush1.msra.mxu0 0.0
        %512 = vmatprep.subr.mxu0 0.0
        %513 = vmatpush1.msra.mxu0 0.0
        %514 = vmatprep.subr.mxu0 %v252
        %515 = vmatpush1.msra.mxu0 %v251
        %516 = vmatprep.subr.mxu0 %v457
        %517 = vmatpush1.msra.mxu0 %v456
        %518 = vmatprep.subr.mxu0 %v488
        %519 = vmatpush1.msra.mxu0 %v487
        %520 = vmatprep.subr.mxu0 %v444
        %521 = vmatpush1.msra.mxu0 %v443
        %522 = vmatprep.subr.mxu0 %v431
        %523 = vmatpush1.msra.mxu0 %v430
        %524 = vmatprep.subr.mxu0 %v477
        %525 = vmatpush1.msra.mxu0 %v476
        %526 = vmatprep.subr.mxu0 %v418
        %527 = vmatpush1.msra.mxu0 %v417
        %528 = vmatprep.subr.mxu0 %v405
        %529 = vmatpush1.msra.mxu0 %v404
        %530 = vmatprep.subr.mxu0 %v466
        %531 = vmatpush1.msra.mxu0 %v465
        %532 = vmatprep.subr.mxu0 %v384
        %533 = vmatpush1.msra.mxu0 %v383
        %534 = vmatprep.subr.mxu0 0.0
        %535 = vmatpush2.msra.mxu0 0.0
        %536 = vmatprep.subr.mxu0 0.0
        %537 = vmatpush2.msra.mxu0 0.0
        %538 = vmatprep.subr.mxu0 0.0
        %539 = vmatpush2.msra.mxu0 0.0
        %540 = vmatprep.subr.mxu0 0.0
        %541 = vmatpush2.msra.mxu0 0.0
        %542 = vmatprep.subr.mxu0 0.0
        %543 = vmatpush2.msra.mxu0 0.0
        %544 = vmatprep.subr.mxu0 0.0
        %545 = vmatpush2.msra.mxu0 0.0
        %546 = vmatprep.subr.mxu0 0.0
        %547 = vmatpush2.msra.mxu0 0.0
        %548 = vmatprep.subr.mxu0 0.0
        %549 = vmatpush2.msra.mxu0 0.0
        %550 = vmatprep.subr.mxu0 0.0
        %551 = vmatpush2.msra.mxu0 0.0
        %552 = vmatprep.subr.mxu0 0.0
        %553 = vmatpush2.msra.mxu0 0.0
        %554 = vmatprep.subr.mxu0 0.0
        %555 = vmatpush2.msra.mxu0 0.0
        %556 = vmatprep.subr.mxu0 0.0
        %557 = vmatpush2.msra.mxu0 0.0
        %558 = vmatprep.subr.mxu0 0.0
        %559 = vmatpush2.msra.mxu0 0.0
        %560 = vmatprep.subr.mxu0 0.0
        %561 = vmatpush2.msra.mxu0 0.0
        %562 = vmatprep.subr.mxu0 0.0
        %563 = vmatpush2.msra.mxu0 0.0
        %564 = vmatprep.subr.mxu0 0.0
        %565 = vmatpush2.msra.mxu0 0.0
        %566 = vmatprep.mubr.f32.mxu0 0.0
        %567 = vmatmul.mubr.f32.gmra.mxu0 %v500
        %v568 = vpop.f32.mrf.mxu0
        %v569 = vadd.f32 %v496, %v568
        %v570 = vpop.f32.mrf.mxu0
        %v571 = vadd.f32 %v496, %v570
        %572 = vdwg.mxu0
        %v573 = vmax.f32 %v569, 0.0
        %v574 = vmax.f32 %v571, 0.0
        %575 = vst [vmem:[%s242] sm:$0xff] %v573
        %576 = vst [vmem:[%s242 + $0x8] sm:$0xff] %v574
        %s577 = sand.u32 %s140, 1
        %s578 = scalar_lea.sflag [#allocation4], %s577
        %s579 = sand.u32 %s140, 1
        %s580 = smul.addr %s579, 16
        %s581 = scalar_lea.vmem [#allocation5], %s580
        // Predicated region
        $region45: #{tpu_custom_call.1} parent=39 // pred_check
          %p582 = pneg %p150
        $region46: #{tpu_custom_call.1} parent=39 // pred_check_branch
          %584 = sbr.rel (%p582) target = $region48
        $region47: #{tpu_custom_call.1} parent=39 // pred_region
          %s586 = ssub.s32 256, 256
          %587 = vsyncadd %s578, %s586
          %s588 = smul.addr %s22, 2
          %s589 = smul.addr %s588, 128
          %s590 = scalar_lea.hbm %s5, %s589
          %s592 = sshll.u32 %s581, 4
          %s593 = int_to_ptr.vmem [resolvable:$true] %s592
          %595 = dma.vmem_to_hbm [thread:$0]  %s593, 256, %s590, %s578
        $region48: #{tpu_custom_call.1} parent=39 // pred_fallthru
          _
      $region40: #{tpu_custom_call.1} parent=5 // pred_fallthru
        _
      %p596 = scmp.le.s32.totalorder 2, %s17
      // Predicated region
      $region49: #{tpu_custom_call.1} parent=5 // pred_check
        %p597 = pneg %p596
      $region50: #{tpu_custom_call.1} parent=5 // pred_check_branch
        %599 = sbr.rel (%p597) target = $region52
      $region51: #{tpu_custom_call.1} parent=5 // pred_region
        %s600 = ssub.s32 %s17, 2
        // Predicated region
        $region53: #{tpu_custom_call.1} parent=51 // pred_check
          %p601 = pneg %p156
        $region54: #{tpu_custom_call.1} parent=51 // pred_check_branch
          %603 = sbr.rel (%p601) target = $region56
        $region55: #{tpu_custom_call.1} parent=51 // pred_region
          %s604 = sand.u32 %s141, 1
          %s605 = scalar_lea.sflag [#allocation4], %s604
          %s606 = sand.u32 %s141, 1
          %s607 = smul.addr %s606, 16
          %s608 = scalar_lea.vmem [#allocation5], %s607
          %609 = dma.done %s605, 256
        $region56: #{tpu_custom_call.1} parent=51 // pred_fallthru
          _
      $region52: #{tpu_custom_call.1} parent=5 // pred_fallthru
        _
    $region6: #{tpu_custom_call.1} parent=1 // loop_footer
      %s21 = sadd.s32 1, %s17
    $region7: #{tpu_custom_call.1} parent=1 // loop_footer_branch
      %16 = sbr.rel target = $region3
    $region8: #{tpu_custom_call.1} parent=1 // loop_exit
      _
    %610 = vsyncpa [#allocation3], 1
    %s611 = scalar_lea.sflag [#allocation3], 1
    %612 = vsyncpa %s611, 1
    %613 = vsyncpa [#allocation4], 1
    %s614 = scalar_lea.sflag [#allocation4], 1
    %615 = vsyncpa %s614, 1

</llo_original>
